<compile_context>
chip_gen: v6e
topology: v6e:2x2x1
jax: 0.10.0
libtpu: 0.0.40
codegen_flags: <defaults>
</compile_context>

<pallas_src>
import math
import functools

import jax
import jax.numpy as jnp
from jax.experimental import pallas as pl
from jax.experimental.pallas import tpu as pltpu

NUM_HEADS = 8
COMPONENT_KEYS = ["style", "colors", "world", "description"]
SEQ_LEN = len(COMPONENT_KEYS)          # L = 4
MAX_BATCH_BLOCK = 512                  # batch rows per grid step


def _mha_kernel(x_ref, w_in_ref, b_in_ref, red_ref, w_out_ref, b_out_ref, o_ref,
                *, seq_len, hidden):
    """Fused multi-head self-attention for a (TB, L*H) block of batch rows.

    Lane layout of x / q / k / v / ctx / out:  lane = position*hidden + feature,
    feature = head*hd + d (torch order).  L*hidden == 128 for the target config.

    x_ref     : (TB, L*H)
    w_in_ref  : (L*H, 3*L*H)  fused QKV weight, columns = [Q_all | K_all | V_all],
                              1/sqrt(hd) folded into the Q block
    b_in_ref  : (1, 3*L*H)
    red_ref   : (L*H, L*H)    0/1 head-sum + replicate matrix kron(I_{L*nh}, 1_{hd,hd})
    w_out_ref : (L*H, L*H)    block-diagonal output projection
    b_out_ref : (1, L*H)
    o_ref     : (TB, L*H)
    """
    lh = seq_len * hidden

    x = x_ref[...]
    qkv = jnp.dot(x, w_in_ref[...], preferred_element_type=jnp.float32) + b_in_ref[...]

    # vreg-aligned 128-lane slices (offsets 0 / 128 / 256): free views.
    q = qkv[:, 0 * lh:1 * lh]
    k = qkv[:, 1 * lh:2 * lh]
    v = qkv[:, 2 * lh:3 * lh]

    red = red_ref[...]

    # For lane-roll shift s, query position i is paired with key position
    # j_s(i) = (i -/+ s) mod L.  The sign depends only on the roll convention;
    # V receives the same shift and the softmax below is element-wise across the
    # shift tiles, so the final result does not depend on the convention.
    scores = []   # scores[s]: (TB, L*H) = score[i, j_s(i), h], replicated over hd lanes
    v_roll = []   # v_roll[s]: (TB, L*H) = v[j_s(i), h, d] at lane (i, h, d)
    for s in range(seq_len):
        if s == 0:
            k_s, v_s = k, v
        else:
            k_s = pltpu.roll(k, shift=s * hidden, axis=1)   # whole-position-group roll (XLU)
            v_s = pltpu.roll(v, shift=s * hidden, axis=1)
        prod = q * k_s                                       # full-width VPU multiply
        # head-dim reduction + broadcast across the hd lanes on the MXU.
        scores.append(jnp.dot(prod, red, preferred_element_type=jnp.float32))
        v_roll.append(v_s)

    # Numerically stable softmax over the L key positions, element-wise across
    # the shift tiles (full-width max / exp / add).
    m = scores[0]
    for s in range(1, seq_len):
        m = jnp.maximum(m, scores[s])
    e = [jnp.exp(scores[s] - m) for s in range(seq_len)]
    den = e[0]
    for s in range(1, seq_len):
        den = den + e[s]
    inv_den = pl.reciprocal(den, approx=False)               # EUP, off the VALU path

    # Weighted value sum; probs are already replicated across the hd lanes, so
    # this is plain full-width multiply-accumulate.  Normalize once at the end.
    ctx = e[0] * v_roll[0]
    for s in range(1, seq_len):
        ctx = ctx + e[s] * v_roll[s]
    ctx = ctx * inv_den                                      # (TB, L*H)

    out = (jnp.dot(ctx, w_out_ref[...], preferred_element_type=jnp.float32)
           + b_out_ref[...])
    o_ref[...] = out.astype(o_ref.dtype)                     # full-128-lane store


def _prepare_weights(params, hidden, num_heads, seq_len, dtype):
    """One-time wrapper-side packing: block-diagonal fused projections with
    columns grouped [Q_all | K_all | V_all], the 1/sqrt(hd) scale folded into Q,
    and the constant head-sum/replicate matrix."""
    nh = num_heads
    hd = hidden // nh
    scale = 1.0 / math.sqrt(hd)
    f32 = jnp.float32

    eye_l = jnp.eye(seq_len, dtype=f32)

    # torch: y = x @ W.T + b  -> per-position block is W.T; kron gives block-diag.
    q_block = jnp.kron(eye_l, params["wq"].astype(f32).T * scale)   # (L*H, L*H)
    k_block = jnp.kron(eye_l, params["wk"].astype(f32).T)
    v_block = jnp.kron(eye_l, params["wv"].astype(f32).T)
    w_in = jnp.concatenate([q_block, k_block, v_block], axis=1)     # (L*H, 3*L*H)
    b_in = jnp.concatenate([
        jnp.tile(params["bq"].astype(f32) * scale, seq_len),
        jnp.tile(params["bk"].astype(f32), seq_len),
        jnp.tile(params["bv"].astype(f32), seq_len),
    ]).reshape(1, -1)                                                # (1, 3*L*H)

    # Head-dim sum + replicate: 1 where (position, head) match, else 0.
    red = jnp.kron(jnp.eye(seq_len * nh, dtype=f32), jnp.ones((hd, hd), f32))

    w_out = jnp.kron(eye_l, params["wo"].astype(f32).T)              # (L*H, L*H)
    b_out = jnp.tile(params["bo"].astype(f32), seq_len).reshape(1, -1)

    cast = lambda a: a.astype(dtype)
    return tuple(map(cast, (w_in, b_in, red, w_out, b_out)))


def _batch_tile(batch):
    """Rows per grid step: the full batch when tiny; otherwise a multiple of 8,
    capped at MAX_BATCH_BLOCK and at cdiv(B,2) so the grid has >= 2 steps
    (lets the "parallel" batch axis use both v7x TensorCores)."""
    if batch <= 8:
        return batch
    half = pl.cdiv(batch, 2)
    return min(MAX_BATCH_BLOCK, ((half + 7) // 8) * 8)


def cross_component_attention(x_lbe, params, num_heads=NUM_HEADS):
    """x_lbe: (L, B, H) seq-first, same convention as torch.nn.MultiheadAttention."""
    L, B, H = x_lbe.shape
    assert H % num_heads == 0, "hidden_size must be divisible by num_heads"
    # Layout sweet spot (full 128-lane vregs, unmasked vld/vst) is L*H == 128;
    # other sizes still compile/run, just partially masked.
    dtype = x_lbe.dtype
    lh = L * H

    w_in, b_in, red, w_out, b_out = _prepare_weights(params, H, num_heads, L, dtype)

    # Lane-dense activations: (B, L*H); with H=32, L=4 this is exactly 128 lanes.
    x_bl = jnp.transpose(x_lbe, (1, 0, 2)).reshape(B, lh)

    tb = _batch_tile(B)
    grid = (pl.cdiv(B, tb),)   # ragged last block is fine: rows are independent,
                               # unspecified tail reads are harmless, tail writes dropped.

    const = lambda g: (0, 0)   # grid-invariant operands (DMAs hoistable by Mosaic)

    out = pl.pallas_call(
        functools.partial(_mha_kernel, seq_len=L, hidden=H),
        out_shape=jax.ShapeDtypeStruct((B, lh), dtype),
        grid_spec=pltpu.PrefetchScalarGridSpec(
            num_scalar_prefetch=0,
            grid=grid,
            in_specs=[
                pl.BlockSpec((tb, lh), lambda g: (g, 0)),   # activations
                pl.BlockSpec((lh, 3 * lh), const),          # fused QKV weight
                pl.BlockSpec((1, 3 * lh), const),           # fused QKV bias
                pl.BlockSpec((lh, lh), const),              # head-sum/replicate matrix
                pl.BlockSpec((lh, lh), const),              # out-proj weight
                pl.BlockSpec((1, lh), const),               # out-proj bias
            ],
            out_specs=pl.BlockSpec((tb, lh), lambda g: (g, 0)),
        ),
        compiler_params=pltpu.CompilerParams(
            dimension_semantics=("parallel",)),             # v7x: both TensorCores
    )(x_bl, w_in, b_in, red, w_out, b_out)

    return jnp.transpose(out.reshape(B, L, H), (1, 0, 2))   # back to (L, B, H)


def mha_reference(x_lbe, params, num_heads=NUM_HEADS):
    """Pure-JAX reference replicating torch.nn.MultiheadAttention forward."""
    L, B, H = x_lbe.shape
    hd = H // num_heads
    scale = 1.0 / math.sqrt(hd)

    def lin(x, w, b):
        return x @ w.T + b

    q = lin(x_lbe, params["wq"], params["bq"])   # (L, B, H)
    k = lin(x_lbe, params["wk"], params["bk"])
    v = lin(x_lbe, params["wv"], params["bv"])

    def split(t):  # (L,B,H) -> (B, nh, L, hd)
        return jnp.transpose(t.reshape(L, B, num_heads, hd), (1, 2, 0, 3))

    qh, kh, vh = split(q), split(k), split(v)
    s = jnp.einsum("bhqd,bhkd->bhqk", qh, kh) * scale
    p = jax.nn.softmax(s, axis=-1)
    ctx = jnp.einsum("bhqk,bhkd->bhqd", p, vh)            # (B, nh, L, hd)
    ctx = jnp.transpose(ctx, (2, 0, 1, 3)).reshape(L, B, H)
    return lin(ctx, params["wo"], params["bo"])


def init_params(key, hidden):
    """Deterministic synthetic init matching nn.MultiheadAttention param shapes."""
    k_in, k_out, k_bi, k_bo = jax.random.split(key, 4)
    in_proj_weight = jax.random.normal(k_in, (3 * hidden, hidden), jnp.float32) * 0.05
    in_proj_bias = jax.random.normal(k_bi, (3 * hidden,), jnp.float32) * 0.05
    out_proj_weight = jax.random.normal(k_out, (hidden, hidden), jnp.float32) * 0.05
    out_proj_bias = jax.random.normal(k_bo, (hidden,), jnp.float32) * 0.05
    return {
        "wq": in_proj_weight[0 * hidden:1 * hidden],
        "wk": in_proj_weight[1 * hidden:2 * hidden],
        "wv": in_proj_weight[2 * hidden:3 * hidden],
        "bq": in_proj_bias[0 * hidden:1 * hidden],
        "bk": in_proj_bias[1 * hidden:2 * hidden],
        "bv": in_proj_bias[2 * hidden:3 * hidden],
        "wo": out_proj_weight,
        "bo": out_proj_bias,
    }


if __name__ == "__main__":
    hidden = 32       # divisible by 8 heads; L*hidden = 128 lanes
    batch = 2

    key = jax.random.PRNGKey(0)
    k_params, *k_comps = jax.random.split(key, 1 + len(COMPONENT_KEYS))

    params = init_params(k_params, hidden)

    # components_dict: one (batch, hidden) embedding per component.
    components_dict = {
        name: jax.random.normal(kc, (batch, hidden), jnp.float32)
        for name, kc in zip(COMPONENT_KEYS, k_comps)
    }

    # torch.stack([...]) -> (L=4, N=batch, E=hidden), seq-first like nn.MultiheadAttention.
    embeddings = jnp.stack([components_dict[k] for k in COMPONENT_KEYS], axis=0)

    attn_out = cross_component_attention(embeddings, params)
    attn_out = jax.block_until_ready(attn_out)

    ref = mha_reference(embeddings, params)
    assert attn_out.shape == ref.shape == (len(COMPONENT_KEYS), batch, hidden)
    assert jnp.allclose(attn_out, ref, atol=2e-5, rtol=2e-5), (
        "mismatch vs reference: max err "
        f"{jnp.max(jnp.abs(attn_out - ref)):.3e}")

    print("KERNEL_OK")
</pallas_src>

<mosaic_0001>
module attributes {stable_mosaic.version = 11 : i64} {
  func.func @_mha_kernel(%arg0: i32, %arg1: memref<2x128xf32, #tpu.memory_space<vmem>>, %arg2: memref<128x384xf32, #tpu.memory_space<vmem>>, %arg3: memref<1x384xf32, #tpu.memory_space<vmem>>, %arg4: memref<128x128xf32, #tpu.memory_space<vmem>>, %arg5: memref<128x128xf32, #tpu.memory_space<vmem>>, %arg6: memref<1x128xf32, #tpu.memory_space<vmem>>, %arg7: memref<2x128xf32, #tpu.memory_space<vmem>>) attributes {dimension_semantics = [#tpu.dimension_semantics<parallel>], iteration_bounds = array<i64: 1>, scalar_prefetch = 0 : i64, scratch_operands = 0 : i64, tpu.core_type = #tpu.core_type<tc>, window_params = [{transform_indices = @transform_0, window_bounds = array<i64: 2, 128>}, {pipeline_mode = #tpu.pipeline_mode<synchronous>, transform_indices = @transform_1, window_bounds = array<i64: 128, 384>}, {pipeline_mode = #tpu.pipeline_mode<synchronous>, transform_indices = @transform_2, window_bounds = array<i64: 1, 384>}, {pipeline_mode = #tpu.pipeline_mode<synchronous>, transform_indices = @transform_3, window_bounds = array<i64: 128, 128>}, {pipeline_mode = #tpu.pipeline_mode<synchronous>, transform_indices = @transform_4, window_bounds = array<i64: 128, 128>}, {pipeline_mode = #tpu.pipeline_mode<synchronous>, transform_indices = @transform_5, window_bounds = array<i64: 1, 128>}, {transform_indices = @transform_6, window_bounds = array<i64: 2, 128>}]} {
    %c0 = arith.constant 0 : index
    %c0_0 = arith.constant 0 : index
    %0 = vector.load %arg1[%c0, %c0_0] : memref<2x128xf32, #tpu.memory_space<vmem>>, vector<2x128xf32>
    %c0_1 = arith.constant 0 : index
    %c0_2 = arith.constant 0 : index
    %1 = vector.load %arg2[%c0_1, %c0_2] : memref<128x384xf32, #tpu.memory_space<vmem>>, vector<128x384xf32>
    %cst = arith.constant dense<0.000000e+00> : vector<2x384xf32>
    %2 = tpu.matmul %0, %1, %cst {dimension_numbers = #tpu.dot_dimension_numbers<[1], [0], [0], [1], [0, 0, 1, 1], [], []>} : vector<2x128xf32>, vector<128x384xf32>, vector<2x384xf32> -> vector<2x384xf32>
    %c0_3 = arith.constant 0 : index
    %c0_4 = arith.constant 0 : index
    %3 = vector.load %arg3[%c0_3, %c0_4] : memref<1x384xf32, #tpu.memory_space<vmem>>, vector<1x384xf32>
    %4 = vector.broadcast %3 : vector<1x384xf32> to vector<2x384xf32>
    %5 = arith.addf %2, %4 : vector<2x384xf32>
    %6 = vector.extract_strided_slice %5 {offsets = [0, 0], sizes = [2, 128], strides = [1, 1]} : vector<2x384xf32> to vector<2x128xf32>
    %7 = vector.extract_strided_slice %5 {offsets = [0, 128], sizes = [2, 128], strides = [1, 1]} : vector<2x384xf32> to vector<2x128xf32>
    %8 = vector.extract_strided_slice %5 {offsets = [0, 256], sizes = [2, 128], strides = [1, 1]} : vector<2x384xf32> to vector<2x128xf32>
    %c0_5 = arith.constant 0 : index
    %c0_6 = arith.constant 0 : index
    %9 = vector.load %arg4[%c0_5, %c0_6] : memref<128x128xf32, #tpu.memory_space<vmem>>, vector<128x128xf32>
    %10 = arith.mulf %6, %7 : vector<2x128xf32>
    %cst_7 = arith.constant dense<0.000000e+00> : vector<2x128xf32>
    %11 = tpu.matmul %10, %9, %cst_7 {dimension_numbers = #tpu.dot_dimension_numbers<[1], [0], [0], [1], [0, 0, 1, 1], [], []>} : vector<2x128xf32>, vector<128x128xf32>, vector<2x128xf32> -> vector<2x128xf32>
    %c32_i32 = arith.constant 32 : i32
    %12 = tpu.dynamic_rotate %7 by %c32_i32 dim 1 : vector<2x128xf32>, i32 -> vector<2x128xf32>
    %c32_i32_8 = arith.constant 32 : i32
    %13 = tpu.dynamic_rotate %8 by %c32_i32_8 dim 1 : vector<2x128xf32>, i32 -> vector<2x128xf32>
    %14 = arith.mulf %6, %12 : vector<2x128xf32>
    %cst_9 = arith.constant dense<0.000000e+00> : vector<2x128xf32>
    %15 = tpu.matmul %14, %9, %cst_9 {dimension_numbers = #tpu.dot_dimension_numbers<[1], [0], [0], [1], [0, 0, 1, 1], [], []>} : vector<2x128xf32>, vector<128x128xf32>, vector<2x128xf32> -> vector<2x128xf32>
    %c64_i32 = arith.constant 64 : i32
    %16 = tpu.dynamic_rotate %7 by %c64_i32 dim 1 : vector<2x128xf32>, i32 -> vector<2x128xf32>
    %c64_i32_10 = arith.constant 64 : i32
    %17 = tpu.dynamic_rotate %8 by %c64_i32_10 dim 1 : vector<2x128xf32>, i32 -> vector<2x128xf32>
    %18 = arith.mulf %6, %16 : vector<2x128xf32>
    %cst_11 = arith.constant dense<0.000000e+00> : vector<2x128xf32>
    %19 = tpu.matmul %18, %9, %cst_11 {dimension_numbers = #tpu.dot_dimension_numbers<[1], [0], [0], [1], [0, 0, 1, 1], [], []>} : vector<2x128xf32>, vector<128x128xf32>, vector<2x128xf32> -> vector<2x128xf32>
    %c96_i32 = arith.constant 96 : i32
    %20 = tpu.dynamic_rotate %7 by %c96_i32 dim 1 : vector<2x128xf32>, i32 -> vector<2x128xf32>
    %c96_i32_12 = arith.constant 96 : i32
    %21 = tpu.dynamic_rotate %8 by %c96_i32_12 dim 1 : vector<2x128xf32>, i32 -> vector<2x128xf32>
    %22 = arith.mulf %6, %20 : vector<2x128xf32>
    %cst_13 = arith.constant dense<0.000000e+00> : vector<2x128xf32>
    %23 = tpu.matmul %22, %9, %cst_13 {dimension_numbers = #tpu.dot_dimension_numbers<[1], [0], [0], [1], [0, 0, 1, 1], [], []>} : vector<2x128xf32>, vector<128x128xf32>, vector<2x128xf32> -> vector<2x128xf32>
    %24 = arith.maximumf %11, %15 : vector<2x128xf32>
    %25 = arith.maximumf %24, %19 : vector<2x128xf32>
    %26 = arith.maximumf %25, %23 : vector<2x128xf32>
    %27 = arith.subf %11, %26 : vector<2x128xf32>
    %28 = math.exp %27 : vector<2x128xf32>
    %29 = arith.subf %15, %26 : vector<2x128xf32>
    %30 = math.exp %29 : vector<2x128xf32>
    %31 = arith.subf %19, %26 : vector<2x128xf32>
    %32 = math.exp %31 : vector<2x128xf32>
    %33 = arith.subf %23, %26 : vector<2x128xf32>
    %34 = math.exp %33 : vector<2x128xf32>
    %35 = arith.addf %28, %30 : vector<2x128xf32>
    %36 = arith.addf %35, %32 : vector<2x128xf32>
    %37 = arith.addf %36, %34 : vector<2x128xf32>
    %38 = tpu.reciprocal %37 : vector<2x128xf32> -> vector<2x128xf32>
    %39 = arith.mulf %28, %8 : vector<2x128xf32>
    %40 = arith.mulf %30, %13 : vector<2x128xf32>
    %41 = arith.addf %39, %40 : vector<2x128xf32>
    %42 = arith.mulf %32, %17 : vector<2x128xf32>
    %43 = arith.addf %41, %42 : vector<2x128xf32>
    %44 = arith.mulf %34, %21 : vector<2x128xf32>
    %45 = arith.addf %43, %44 : vector<2x128xf32>
    %46 = arith.mulf %45, %38 : vector<2x128xf32>
    %c0_14 = arith.constant 0 : index
    %c0_15 = arith.constant 0 : index
    %47 = vector.load %arg5[%c0_14, %c0_15] : memref<128x128xf32, #tpu.memory_space<vmem>>, vector<128x128xf32>
    %cst_16 = arith.constant dense<0.000000e+00> : vector<2x128xf32>
    %48 = tpu.matmul %46, %47, %cst_16 {dimension_numbers = #tpu.dot_dimension_numbers<[1], [0], [0], [1], [0, 0, 1, 1], [], []>} : vector<2x128xf32>, vector<128x128xf32>, vector<2x128xf32> -> vector<2x128xf32>
    %c0_17 = arith.constant 0 : index
    %c0_18 = arith.constant 0 : index
    %49 = vector.load %arg6[%c0_17, %c0_18] : memref<1x128xf32, #tpu.memory_space<vmem>>, vector<1x128xf32>
    %50 = vector.broadcast %49 : vector<1x128xf32> to vector<2x128xf32>
    %51 = arith.addf %48, %50 : vector<2x128xf32>
    %c0_19 = arith.constant 0 : index
    %c0_20 = arith.constant 0 : index
    %52 = vector.load %arg7[%c0_19, %c0_20] : memref<2x128xf32, #tpu.memory_space<vmem>>, vector<2x128xf32>
    tpu.vector_store %arg7[%c0_19, %c0_20], %51 {strides = array<i32>} : memref<2x128xf32, #tpu.memory_space<vmem>>, vector<2x128xf32>,
    return
  }
  func.func @transform_0(%arg0: i32) -> (i32, i32) {
    %c0_i32 = arith.constant 0 : i32
    %c0_i32_0 = arith.constant 0 : i32
    return %arg0, %c0_i32 : i32, i32
  }
  func.func @transform_1(%arg0: i32) -> (i32, i32) {
    %c0_i32 = arith.constant 0 : i32
    %c0_i32_0 = arith.constant 0 : i32
    %c0_i32_1 = arith.constant 0 : i32
    return %c0_i32, %c0_i32_0 : i32, i32
  }
  func.func @transform_2(%arg0: i32) -> (i32, i32) {
    %c0_i32 = arith.constant 0 : i32
    %c0_i32_0 = arith.constant 0 : i32
    %c0_i32_1 = arith.constant 0 : i32
    return %c0_i32, %c0_i32_0 : i32, i32
  }
  func.func @transform_3(%arg0: i32) -> (i32, i32) {
    %c0_i32 = arith.constant 0 : i32
    %c0_i32_0 = arith.constant 0 : i32
    %c0_i32_1 = arith.constant 0 : i32
    return %c0_i32, %c0_i32_0 : i32, i32
  }
  func.func @transform_4(%arg0: i32) -> (i32, i32) {
    %c0_i32 = arith.constant 0 : i32
    %c0_i32_0 = arith.constant 0 : i32
    %c0_i32_1 = arith.constant 0 : i32
    return %c0_i32, %c0_i32_0 : i32, i32
  }
  func.func @transform_5(%arg0: i32) -> (i32, i32) {
    %c0_i32 = arith.constant 0 : i32
    %c0_i32_0 = arith.constant 0 : i32
    %c0_i32_1 = arith.constant 0 : i32
    return %c0_i32, %c0_i32_0 : i32, i32
  }
  func.func @transform_6(%arg0: i32) -> (i32, i32) {
    %c0_i32 = arith.constant 0 : i32
    %c0_i32_0 = arith.constant 0 : i32
    return %arg0, %c0_i32 : i32, i32
  }
}

</mosaic_0001>

<llo_original>
// kernel: tpu_custom_call.1
$region0: #{tpu_custom_call.1}
  #allocation0 [shape = 'u32[]', space=smem, size = 0x4, offset = 0x4, fixed_abs, tag = 'smem constant byte address 0x4 - core index']
  #allocation1 [shape = 'u32[144,128]{1,0:T(1,128)}', space=vmem, size = 0x12000, scoped, tag = 'internal scratch']
  %s0 = inlined_call_operand.hbm [shape: f32[2,128], index: 0, kind: input, shape index: {}]
  %s1 = inlined_call_operand.hbm [shape: f32[128,384], index: 1, kind: input, shape index: {}]
  %s2 = inlined_call_operand.vmem [shape: f32[1,384], index: 2, kind: input, shape index: {}]
  %s3 = inlined_call_operand.hbm [shape: f32[128,128], index: 3, kind: input, shape index: {}]
  %s4 = inlined_call_operand.hbm [shape: f32[128,128], index: 4, kind: input, shape index: {}]
  %s5 = inlined_call_operand.vmem [shape: f32[1,128], index: 5, kind: input, shape index: {}]
  %s6 = inlined_call_operand.hbm [shape: f32[2,128], index: 6, kind: output, shape index: {}]
  %s7 = sld [smem:[#allocation0]]
  $region50: #{tpu_custom_call.1} parent=0
    _
  %s9 = ssub.s32 1, %s7
  %s10 = scalar_select 0, %s9, %s7
  $region1: #{tpu_custom_call.1} parent=0
    #allocation2 [shape = 'u8[1024]{0}', space=vmem, size = 0x400, scoped, tag = 'input window, operand 0, single buffered']
    #allocation3 [shape = 's32[1]{0}', space=sflag, size = 0x4, scoped, tag = 'scoped memory for tpu_custom_call.1']
    #allocation4 [shape = 's32[1]{0}', space=sflag, size = 0x4, scoped, tag = 'scoped memory for tpu_custom_call.1']
    #allocation5 [shape = 'u8[196608]{0}', space=vmem, size = 0x30000, scoped, tag = 'input window, operand 1, single buffered']
    #allocation6 [shape = 's32[1]{0}', space=sflag, size = 0x4, scoped, tag = 'scoped memory for tpu_custom_call.1']
    #allocation7 [shape = 'u8[65536]{0}', space=vmem, size = 0x10000, scoped, tag = 'input window, operand 3, single buffered']
    #allocation8 [shape = 'u8[65536]{0}', space=vmem, size = 0x10000, scoped, tag = 'input window, operand 4, single buffered']
    #allocation9 [shape = 's32[1]{0}', space=sflag, size = 0x4, scoped, tag = 'scoped memory for tpu_custom_call.1']
    #allocation10 [shape = 'u8[1024]{0}', space=vmem, size = 0x400, scoped, tag = 'output window, operand 0, single buffered']
    %11 = vsyncpa [#allocation3], 0
    %12 = vsyncpa [#allocation6], 0
    %13 = vsyncpa [#allocation9], 0
    %14 = vsyncpa [#allocation4], 0
    // Predicated region
    $region2: #{tpu_custom_call.1} parent=1 // pred_check
      _
    $region3: #{tpu_custom_call.1} parent=1 // pred_check_branch
      %16 = sbr.rel (0) target = $region5
    $region4: #{tpu_custom_call.1} parent=1 // pred_region
      %s18 = ssub.s32 32, 32
      %19 = vsyncadd [#allocation3], %s18
      %s21 = sshll.u32 [#allocation2], 4
      %s22 = int_to_ptr.vmem [resolvable:$true] %s21
      %24 = dma.hbm_to_vmem [thread:$0]  %s0, 32, %s22, [#allocation3]
    $region5: #{tpu_custom_call.1} parent=1 // pred_fallthru
      _
    // Predicated region
    $region6: #{tpu_custom_call.1} parent=1 // pred_check
      _
    $region7: #{tpu_custom_call.1} parent=1 // pred_check_branch
      %26 = sbr.rel (0) target = $region9
    $region8: #{tpu_custom_call.1} parent=1 // pred_region
      %s28 = ssub.s32 6144, 6144
      %29 = vsyncadd [#allocation6], %s28
      %s30 = sshll.u32 [#allocation5], 4
      %s31 = int_to_ptr.vmem [resolvable:$true] %s30
      %36 = dma.hbm_to_vmem [thread:$0]  %s1, 6144, %s31, [#allocation6], 384, 384, 24
    $region9: #{tpu_custom_call.1} parent=1 // pred_fallthru
      _
    // Predicated region
    $region10: #{tpu_custom_call.1} parent=1 // pred_check
      _
    $region11: #{tpu_custom_call.1} parent=1 // pred_check_branch
      %38 = sbr.rel (0) target = $region13
    $region12: #{tpu_custom_call.1} parent=1 // pred_region
      _
    $region13: #{tpu_custom_call.1} parent=1 // pred_fallthru
      _
    // Predicated region
    $region14: #{tpu_custom_call.1} parent=1 // pred_check
      _
    $region15: #{tpu_custom_call.1} parent=1 // pred_check_branch
      %40 = sbr.rel (0) target = $region17
    $region16: #{tpu_custom_call.1} parent=1 // pred_region
      %s42 = ssub.s32 2048, 2048
      %43 = vsyncadd [#allocation6], %s42
      %s44 = sshll.u32 [#allocation7], 4
      %s45 = int_to_ptr.vmem [resolvable:$true] %s44
      %50 = dma.hbm_to_vmem [thread:$0]  %s3, 2048, %s45, [#allocation6], 128, 128, 8
    $region17: #{tpu_custom_call.1} parent=1 // pred_fallthru
      _
    // Predicated region
    $region18: #{tpu_custom_call.1} parent=1 // pred_check
      _
    $region19: #{tpu_custom_call.1} parent=1 // pred_check_branch
      %52 = sbr.rel (0) target = $region21
    $region20: #{tpu_custom_call.1} parent=1 // pred_region
      %s54 = ssub.s32 2048, 2048
      %55 = vsyncadd [#allocation9], %s54
      %s56 = sshll.u32 [#allocation8], 4
      %s57 = int_to_ptr.vmem [resolvable:$true] %s56
      %62 = dma.hbm_to_vmem [thread:$0]  %s4, 2048, %s57, [#allocation9], 128, 128, 8
    $region21: #{tpu_custom_call.1} parent=1 // pred_fallthru
      _
    // Predicated region
    $region22: #{tpu_custom_call.1} parent=1 // pred_check
      _
    $region23: #{tpu_custom_call.1} parent=1 // pred_check_branch
      %64 = sbr.rel (0) target = $region25
    $region24: #{tpu_custom_call.1} parent=1 // pred_region
      _
    $region25: #{tpu_custom_call.1} parent=1 // pred_fallthru
      _
    // Predicated region
    $region26: #{tpu_custom_call.1} parent=1 // pred_check
      _
    $region27: #{tpu_custom_call.1} parent=1 // pred_check_branch
      %66 = sbr.rel (0) target = $region29
    $region28: #{tpu_custom_call.1} parent=1 // pred_region
      %67 = dma.done [#allocation3], 32
    $region29: #{tpu_custom_call.1} parent=1 // pred_fallthru
      _
    // Predicated region
    $region30: #{tpu_custom_call.1} parent=1 // pred_check
      _
    $region31: #{tpu_custom_call.1} parent=1 // pred_check_branch
      %69 = sbr.rel (0) target = $region33
    $region32: #{tpu_custom_call.1} parent=1 // pred_region
      %70 = dma.done [#allocation6], 6144
    $region33: #{tpu_custom_call.1} parent=1 // pred_fallthru
      _
    // Predicated region
    $region34: #{tpu_custom_call.1} parent=1 // pred_check
      _
    $region35: #{tpu_custom_call.1} parent=1 // pred_check_branch
      %72 = sbr.rel (0) target = $region37
    $region36: #{tpu_custom_call.1} parent=1 // pred_region
      %73 = dma.done [#allocation6], 2048
    $region37: #{tpu_custom_call.1} parent=1 // pred_fallthru
      _
    // Predicated region
    $region38: #{tpu_custom_call.1} parent=1 // pred_check
      _
    $region39: #{tpu_custom_call.1} parent=1 // pred_check_branch
      %75 = sbr.rel (0) target = $region41
    $region40: #{tpu_custom_call.1} parent=1 // pred_region
      %76 = dma.done [#allocation9], 2048
    $region41: #{tpu_custom_call.1} parent=1 // pred_fallthru
      _
    %v77 = vld [vmem:[#allocation2] sm:$0x3]
    %v78 = vld [vmem:[#allocation5] sm:$0xff]
    %v79 = vld [vmem:[#allocation5 + $0x8] sm:$0xff]
    %v80 = vld [vmem:[#allocation5 + $0x10] sm:$0xff]
    %v81 = vld [vmem:[#allocation5 + $0x18] sm:$0xff]
    %v82 = vld [vmem:[#allocation5 + $0x20] sm:$0xff]
    %v83 = vld [vmem:[#allocation5 + $0x28] sm:$0xff]
    %v84 = vld [vmem:[#allocation5 + $0x30] sm:$0xff]
    %v85 = vld [vmem:[#allocation5 + $0x38] sm:$0xff]
    %v86 = vld [vmem:[#allocation5 + $0x40] sm:$0xff]
    %v87 = vld [vmem:[#allocation5 + $0x48] sm:$0xff]
    %v88 = vld [vmem:[#allocation5 + $0x50] sm:$0xff]
    %v89 = vld [vmem:[#allocation5 + $0x58] sm:$0xff]
    %v90 = vld [vmem:[#allocation5 + $0x60] sm:$0xff]
    %v91 = vld [vmem:[#allocation5 + $0x68] sm:$0xff]
    %v92 = vld [vmem:[#allocation5 + $0x70] sm:$0xff]
    %v93 = vld [vmem:[#allocation5 + $0x78] sm:$0xff]
    %v94 = vld [vmem:[#allocation5 + $0x80] sm:$0xff]
    %v95 = vld [vmem:[#allocation5 + $0x88] sm:$0xff]
    %v96 = vld [vmem:[#allocation5 + $0x90] sm:$0xff]
    %v97 = vld [vmem:[#allocation5 + $0x98] sm:$0xff]
    %v98 = vld [vmem:[#allocation5 + $0xa0] sm:$0xff]
    %v99 = vld [vmem:[#allocation5 + $0xa8] sm:$0xff]
    %v100 = vld [vmem:[#allocation5 + $0xb0] sm:$0xff]
    %v101 = vld [vmem:[#allocation5 + $0xb8] sm:$0xff]
    %v102 = vld [vmem:[#allocation5 + $0xc0] sm:$0xff]
    %v103 = vld [vmem:[#allocation5 + $0xc8] sm:$0xff]
    %v104 = vld [vmem:[#allocation5 + $0xd0] sm:$0xff]
    %v105 = vld [vmem:[#allocation5 + $0xd8] sm:$0xff]
    %v106 = vld [vmem:[#allocation5 + $0xe0] sm:$0xff]
    %v107 = vld [vmem:[#allocation5 + $0xe8] sm:$0xff]
    %v108 = vld [vmem:[#allocation5 + $0xf0] sm:$0xff]
    %v109 = vld [vmem:[#allocation5 + $0xf8] sm:$0xff]
    %v110 = vld [vmem:[#allocation5 + $0x100] sm:$0xff]
    %v111 = vld [vmem:[#allocation5 + $0x108] sm:$0xff]
    %v112 = vld [vmem:[#allocation5 + $0x110] sm:$0xff]
    %v113 = vld [vmem:[#allocation5 + $0x118] sm:$0xff]
    %v114 = vld [vmem:[#allocation5 + $0x120] sm:$0xff]
    %v115 = vld [vmem:[#allocation5 + $0x128] sm:$0xff]
    %v116 = vld [vmem:[#allocation5 + $0x130] sm:$0xff]
    %v117 = vld [vmem:[#allocation5 + $0x138] sm:$0xff]
    %v118 = vld [vmem:[#allocation5 + $0x140] sm:$0xff]
    %v119 = vld [vmem:[#allocation5 + $0x148] sm:$0xff]
    %v120 = vld [vmem:[#allocation5 + $0x150] sm:$0xff]
    %v121 = vld [vmem:[#allocation5 + $0x158] sm:$0xff]
    %v122 = vld [vmem:[#allocation5 + $0x160] sm:$0xff]
    %v123 = vld [vmem:[#allocation5 + $0x168] sm:$0xff]
    %v124 = vld [vmem:[#allocation5 + $0x170] sm:$0xff]
    %v125 = vld [vmem:[#allocation5 + $0x178] sm:$0xff]
    %v126 = vld [vmem:[%s2] sm:$0x7]
    %v128 = vlaneseq
    %v129 = vshrl.u32 %v128, 7
    %v130 = vsub.s32 0, %v129
    %v131 = vrot.slane %v126, %v130
    %v132 = vlaneseq
    %v133 = vshrl.u32 %v132, 7
    %v134 = vsub.s32 1, %v133
    %v135 = vrot.slane %v126, %v134
    %v136 = vlaneseq
    %v137 = vshrl.u32 %v136, 7
    %v138 = vsub.s32 2, %v137
    %v139 = vrot.slane %v126, %v138
    %143 = vmatprep.subr.mxu0 %v124
    %144 = vmatpush1.msra.mxu0 %v123
    %145 = vmatprep.subr.mxu0 %v121
    %146 = vmatpush1.msra.mxu0 %v120
    %147 = vmatprep.subr.mxu0 %v118
    %148 = vmatpush1.msra.mxu0 %v117
    %149 = vmatprep.subr.mxu0 %v115
    %150 = vmatpush1.msra.mxu0 %v114
    %151 = vmatprep.subr.mxu0 %v112
    %152 = vmatpush1.msra.mxu0 %v111
    %153 = vmatprep.subr.mxu0 %v109
    %154 = vmatpush1.msra.mxu0 %v108
    %155 = vmatprep.subr.mxu0 %v106
    %156 = vmatpush1.msra.mxu0 %v105
    %157 = vmatprep.subr.mxu0 %v103
    %158 = vmatpush1.msra.mxu0 %v102
    %159 = vmatprep.subr.mxu0 %v100
    %160 = vmatpush1.msra.mxu0 %v99
    %161 = vmatprep.subr.mxu0 %v97
    %162 = vmatpush1.msra.mxu0 %v96
    %163 = vmatprep.subr.mxu0 %v94
    %164 = vmatpush1.msra.mxu0 %v93
    %165 = vmatprep.subr.mxu0 %v91
    %166 = vmatpush1.msra.mxu0 %v90
    %167 = vmatprep.subr.mxu0 %v88
    %168 = vmatpush1.msra.mxu0 %v87
    %169 = vmatprep.subr.mxu0 %v85
    %170 = vmatpush1.msra.mxu0 %v84
    %171 = vmatprep.subr.mxu0 %v82
    %172 = vmatpush1.msra.mxu0 %v81
    %173 = vmatprep.subr.mxu0 %v79
    %174 = vmatpush1.msra.mxu0 %v78
    %175 = vmatprep.subr.mxu0 0.0
    %176 = vmatpush2.msra.mxu0 0.0
    %177 = vmatprep.subr.mxu0 0.0
    %178 = vmatpush2.msra.mxu0 0.0
    %179 = vmatprep.subr.mxu0 0.0
    %180 = vmatpush2.msra.mxu0 0.0
    %181 = vmatprep.subr.mxu0 0.0
    %182 = vmatpush2.msra.mxu0 0.0
    %183 = vmatprep.subr.mxu0 0.0
    %184 = vmatpush2.msra.mxu0 0.0
    %185 = vmatprep.subr.mxu0 0.0
    %186 = vmatpush2.msra.mxu0 0.0
    %187 = vmatprep.subr.mxu0 0.0
    %188 = vmatpush2.msra.mxu0 0.0
    %189 = vmatprep.subr.mxu0 0.0
    %190 = vmatpush2.msra.mxu0 0.0
    %191 = vmatprep.subr.mxu0 0.0
    %192 = vmatpush2.msra.mxu0 0.0
    %193 = vmatprep.subr.mxu0 0.0
    %194 = vmatpush2.msra.mxu0 0.0
    %195 = vmatprep.subr.mxu0 0.0
    %196 = vmatpush2.msra.mxu0 0.0
    %197 = vmatprep.subr.mxu0 0.0
    %198 = vmatpush2.msra.mxu0 0.0
    %199 = vmatprep.subr.mxu0 0.0
    %200 = vmatpush2.msra.mxu0 0.0
    %201 = vmatprep.subr.mxu0 0.0
    %202 = vmatpush2.msra.mxu0 0.0
    %203 = vmatprep.subr.mxu0 0.0
    %204 = vmatpush2.msra.mxu0 0.0
    %205 = vmatprep.subr.mxu0 0.0
    %206 = vmatpush2.msra.mxu0 0.0
    %207 = vmatprep.mubr.f32.mxu0 0.0
    %208 = vmatmul.mubr.f32.gmra.mxu0 %v77
    %v209 = vpop.f32.mrf.mxu0
    %v210 = vadd.f32 %v131, %v209
    %v211 = vpop.f32.mrf.mxu0
    %v212 = vadd.f32 %v135, %v211
    %213 = vdwg.mxu0
    %214 = vmatprep.subr.mxu0 0.0
    %215 = vmatpush1.msra.mxu0 %v125
    %216 = vmatprep.subr.mxu0 0.0
    %217 = vmatpush1.msra.mxu0 %v122
    %218 = vmatprep.subr.mxu0 0.0
    %219 = vmatpush1.msra.mxu0 %v119
    %220 = vmatprep.subr.mxu0 0.0
    %221 = vmatpush1.msra.mxu0 %v116
    %222 = vmatprep.subr.mxu0 0.0
    %223 = vmatpush1.msra.mxu0 %v113
    %224 = vmatprep.subr.mxu0 0.0
    %225 = vmatpush1.msra.mxu0 %v110
    %226 = vmatprep.subr.mxu0 0.0
    %227 = vmatpush1.msra.mxu0 %v107
    %228 = vmatprep.subr.mxu0 0.0
    %229 = vmatpush1.msra.mxu0 %v104
    %230 = vmatprep.subr.mxu0 0.0
    %231 = vmatpush1.msra.mxu0 %v101
    %232 = vmatprep.subr.mxu0 0.0
    %233 = vmatpush1.msra.mxu0 %v98
    %234 = vmatprep.subr.mxu0 0.0
    %235 = vmatpush1.msra.mxu0 %v95
    %236 = vmatprep.subr.mxu0 0.0
    %237 = vmatpush1.msra.mxu0 %v92
    %238 = vmatprep.subr.mxu0 0.0
    %239 = vmatpush1.msra.mxu0 %v89
    %240 = vmatprep.subr.mxu0 0.0
    %241 = vmatpush1.msra.mxu0 %v86
    %242 = vmatprep.subr.mxu0 0.0
    %243 = vmatpush1.msra.mxu0 %v83
    %244 = vmatprep.subr.mxu0 0.0
    %245 = vmatpush1.msra.mxu0 %v80
    %246 = vmatprep.subr.mxu0 0.0
    %247 = vmatpush2.msra.mxu0 0.0
    %248 = vmatprep.subr.mxu0 0.0
    %249 = vmatpush2.msra.mxu0 0.0
    %250 = vmatprep.subr.mxu0 0.0
    %251 = vmatpush2.msra.mxu0 0.0
    %252 = vmatprep.subr.mxu0 0.0
    %253 = vmatpush2.msra.mxu0 0.0
    %254 = vmatprep.subr.mxu0 0.0
    %255 = vmatpush2.msra.mxu0 0.0
    %256 = vmatprep.subr.mxu0 0.0
    %257 = vmatpush2.msra.mxu0 0.0
    %258 = vmatprep.subr.mxu0 0.0
    %259 = vmatpush2.msra.mxu0 0.0
    %260 = vmatprep.subr.mxu0 0.0
    %261 = vmatpush2.msra.mxu0 0.0
    %262 = vmatprep.subr.mxu0 0.0
    %263 = vmatpush2.msra.mxu0 0.0
    %264 = vmatprep.subr.mxu0 0.0
    %265 = vmatpush2.msra.mxu0 0.0
    %266 = vmatprep.subr.mxu0 0.0
    %267 = vmatpush2.msra.mxu0 0.0
    %268 = vmatprep.subr.mxu0 0.0
    %269 = vmatpush2.msra.mxu0 0.0
    %270 = vmatprep.subr.mxu0 0.0
    %271 = vmatpush2.msra.mxu0 0.0
    %272 = vmatprep.subr.mxu0 0.0
    %273 = vmatpush2.msra.mxu0 0.0
    %274 = vmatprep.subr.mxu0 0.0
    %275 = vmatpush2.msra.mxu0 0.0
    %276 = vmatprep.subr.mxu0 0.0
    %277 = vmatpush2.msra.mxu0 0.0
    %278 = vmatprep.mubr.f32.mxu0 0.0
    %279 = vmatmul.mubr.f32.gmra.mxu0 %v77
    %v280 = vpop.f32.mrf.mxu0
    %v281 = vadd.f32 %v139, %v280
    %v282 = vpop.f32.mrf.mxu0
    %283 = vdwg.mxu0
    %v284 = vld [vmem:[#allocation7] sm:$0xff]
    %v285 = vld [vmem:[#allocation7 + $0x8] sm:$0xff]
    %v286 = vld [vmem:[#allocation7 + $0x10] sm:$0xff]
    %v287 = vld [vmem:[#allocation7 + $0x18] sm:$0xff]
    %v288 = vld [vmem:[#allocation7 + $0x20] sm:$0xff]
    %v289 = vld [vmem:[#allocation7 + $0x28] sm:$0xff]
    %v290 = vld [vmem:[#allocation7 + $0x30] sm:$0xff]
    %v291 = vld [vmem:[#allocation7 + $0x38] sm:$0xff]
    %v292 = vld [vmem:[#allocation7 + $0x40] sm:$0xff]
    %v293 = vld [vmem:[#allocation7 + $0x48] sm:$0xff]
    %v294 = vld [vmem:[#allocation7 + $0x50] sm:$0xff]
    %v295 = vld [vmem:[#allocation7 + $0x58] sm:$0xff]
    %v296 = vld [vmem:[#allocation7 + $0x60] sm:$0xff]
    %v297 = vld [vmem:[#allocation7 + $0x68] sm:$0xff]
    %v298 = vld [vmem:[#allocation7 + $0x70] sm:$0xff]
    %v299 = vld [vmem:[#allocation7 + $0x78] sm:$0xff]
    %v300 = vmul.f32 %v210, %v212
    %301 = vmatprep.subr.mxu0 0.0
    %302 = vmatpush1.msra.mxu0 %v299
    %303 = vmatprep.subr.mxu0 0.0
    %304 = vmatpush1.msra.mxu0 %v298
    %305 = vmatprep.subr.mxu0 0.0
    %306 = vmatpush1.msra.mxu0 %v297
    %307 = vmatprep.subr.mxu0 0.0
    %308 = vmatpush1.msra.mxu0 %v296
    %309 = vmatprep.subr.mxu0 0.0
    %310 = vmatpush1.msra.mxu0 %v295
    %311 = vmatprep.subr.mxu0 0.0
    %312 = vmatpush1.msra.mxu0 %v294
    %313 = vmatprep.subr.mxu0 0.0
    %314 = vmatpush1.msra.mxu0 %v293
    %315 = vmatprep.subr.mxu0 0.0
    %316 = vmatpush1.msra.mxu0 %v292
    %317 = vmatprep.subr.mxu0 0.0
    %318 = vmatpush1.msra.mxu0 %v291
    %319 = vmatprep.subr.mxu0 0.0
    %320 = vmatpush1.msra.mxu0 %v290
    %321 = vmatprep.subr.mxu0 0.0
    %322 = vmatpush1.msra.mxu0 %v289
    %323 = vmatprep.subr.mxu0 0.0
    %324 = vmatpush1.msra.mxu0 %v288
    %325 = vmatprep.subr.mxu0 0.0
    %326 = vmatpush1.msra.mxu0 %v287
    %327 = vmatprep.subr.mxu0 0.0
    %328 = vmatpush1.msra.mxu0 %v286
    %329 = vmatprep.subr.mxu0 0.0
    %330 = vmatpush1.msra.mxu0 %v285
    %331 = vmatprep.subr.mxu0 0.0
    %332 = vmatpush1.msra.mxu0 %v284
    %333 = vmatprep.subr.mxu0 0.0
    %334 = vmatpush2.msra.mxu0 0.0
    %335 = vmatprep.subr.mxu0 0.0
    %336 = vmatpush2.msra.mxu0 0.0
    %337 = vmatprep.subr.mxu0 0.0
    %338 = vmatpush2.msra.mxu0 0.0
    %339 = vmatprep.subr.mxu0 0.0
    %340 = vmatpush2.msra.mxu0 0.0
    %341 = vmatprep.subr.mxu0 0.0
    %342 = vmatpush2.msra.mxu0 0.0
    %343 = vmatprep.subr.mxu0 0.0
    %344 = vmatpush2.msra.mxu0 0.0
    %345 = vmatprep.subr.mxu0 0.0
    %346 = vmatpush2.msra.mxu0 0.0
    %347 = vmatprep.subr.mxu0 0.0
    %348 = vmatpush2.msra.mxu0 0.0
    %349 = vmatprep.subr.mxu0 0.0
    %350 = vmatpush2.msra.mxu0 0.0
    %351 = vmatprep.subr.mxu0 0.0
    %352 = vmatpush2.msra.mxu0 0.0
    %353 = vmatprep.subr.mxu0 0.0
    %354 = vmatpush2.msra.mxu0 0.0
    %355 = vmatprep.subr.mxu0 0.0
    %356 = vmatpush2.msra.mxu0 0.0
    %357 = vmatprep.subr.mxu0 0.0
    %358 = vmatpush2.msra.mxu0 0.0
    %359 = vmatprep.subr.mxu0 0.0
    %360 = vmatpush2.msra.mxu0 0.0
    %361 = vmatprep.subr.mxu0 0.0
    %362 = vmatpush2.msra.mxu0 0.0
    %363 = vmatprep.subr.mxu0 0.0
    %364 = vmatpush2.msra.mxu0 0.0
    %365 = vmatprep.mubr.f32.mxu0 0.0
    %366 = vmatmul.mubr.f32.gmra.mxu0 %v300
    %v367 = vpop.f32.mrf.mxu0
    %v368 = vadd.f32 0.0, %v367
    %v369 = vpop.f32.mrf.mxu0
    %370 = vdwg.mxu0
    %371 = vrot.lane.b32.xlu0 %v212, 32
    %v372 = vpop.permute.xlu0 %371
    %373 = vrot.lane.b32.xlu0 %v281, 32
    %v374 = vpop.permute.xlu0 %373
    %v375 = vmul.f32 %v210, %v372
    %376 = vmatprep.subr.mxu0 0.0
    %377 = vmatpush1.msra.mxu0 %v299
    %378 = vmatprep.subr.mxu0 0.0
    %379 = vmatpush1.msra.mxu0 %v298
    %380 = vmatprep.subr.mxu0 0.0
    %381 = vmatpush1.msra.mxu0 %v297
    %382 = vmatprep.subr.mxu0 0.0
    %383 = vmatpush1.msra.mxu0 %v296
    %384 = vmatprep.subr.mxu0 0.0
    %385 = vmatpush1.msra.mxu0 %v295
    %386 = vmatprep.subr.mxu0 0.0
    %387 = vmatpush1.msra.mxu0 %v294
    %388 = vmatprep.subr.mxu0 0.0
    %389 = vmatpush1.msra.mxu0 %v293
    %390 = vmatprep.subr.mxu0 0.0
    %391 = vmatpush1.msra.mxu0 %v292
    %392 = vmatprep.subr.mxu0 0.0
    %393 = vmatpush1.msra.mxu0 %v291
    %394 = vmatprep.subr.mxu0 0.0
    %395 = vmatpush1.msra.mxu0 %v290
    %396 = vmatprep.subr.mxu0 0.0
    %397 = vmatpush1.msra.mxu0 %v289
    %398 = vmatprep.subr.mxu0 0.0
    %399 = vmatpush1.msra.mxu0 %v288
    %400 = vmatprep.subr.mxu0 0.0
    %401 = vmatpush1.msra.mxu0 %v287
    %402 = vmatprep.subr.mxu0 0.0
    %403 = vmatpush1.msra.mxu0 %v286
    %404 = vmatprep.subr.mxu0 0.0
    %405 = vmatpush1.msra.mxu0 %v285
    %406 = vmatprep.subr.mxu0 0.0
    %407 = vmatpush1.msra.mxu0 %v284
    %408 = vmatprep.subr.mxu0 0.0
    %409 = vmatpush2.msra.mxu0 0.0
    %410 = vmatprep.subr.mxu0 0.0
    %411 = vmatpush2.msra.mxu0 0.0
    %412 = vmatprep.subr.mxu0 0.0
    %413 = vmatpush2.msra.mxu0 0.0
    %414 = vmatprep.subr.mxu0 0.0
    %415 = vmatpush2.msra.mxu0 0.0
    %416 = vmatprep.subr.mxu0 0.0
    %417 = vmatpush2.msra.mxu0 0.0
    %418 = vmatprep.subr.mxu0 0.0
    %419 = vmatpush2.msra.mxu0 0.0
    %420 = vmatprep.subr.mxu0 0.0
    %421 = vmatpush2.msra.mxu0 0.0
    %422 = vmatprep.subr.mxu0 0.0
    %423 = vmatpush2.msra.mxu0 0.0
    %424 = vmatprep.subr.mxu0 0.0
    %425 = vmatpush2.msra.mxu0 0.0
    %426 = vmatprep.subr.mxu0 0.0
    %427 = vmatpush2.msra.mxu0 0.0
    %428 = vmatprep.subr.mxu0 0.0
    %429 = vmatpush2.msra.mxu0 0.0
    %430 = vmatprep.subr.mxu0 0.0
    %431 = vmatpush2.msra.mxu0 0.0
    %432 = vmatprep.subr.mxu0 0.0
    %433 = vmatpush2.msra.mxu0 0.0
    %434 = vmatprep.subr.mxu0 0.0
    %435 = vmatpush2.msra.mxu0 0.0
    %436 = vmatprep.subr.mxu0 0.0
    %437 = vmatpush2.msra.mxu0 0.0
    %438 = vmatprep.subr.mxu0 0.0
    %439 = vmatpush2.msra.mxu0 0.0
    %440 = vmatprep.mubr.f32.mxu0 0.0
    %441 = vmatmul.mubr.f32.gmra.mxu0 %v375
    %v442 = vpop.f32.mrf.mxu0
    %v443 = vadd.f32 0.0, %v442
    %v444 = vpop.f32.mrf.mxu0
    %445 = vdwg.mxu0
    %446 = vrot.lane.b32.xlu0 %v212, 64
    %v447 = vpop.permute.xlu0 %446
    %448 = vrot.lane.b32.xlu0 %v281, 64
    %v449 = vpop.permute.xlu0 %448
    %v450 = vmul.f32 %v210, %v447
    %451 = vmatprep.subr.mxu0 0.0
    %452 = vmatpush1.msra.mxu0 %v299
    %453 = vmatprep.subr.mxu0 0.0
    %454 = vmatpush1.msra.mxu0 %v298
    %455 = vmatprep.subr.mxu0 0.0
    %456 = vmatpush1.msra.mxu0 %v297
    %457 = vmatprep.subr.mxu0 0.0
    %458 = vmatpush1.msra.mxu0 %v296
    %459 = vmatprep.subr.mxu0 0.0
    %460 = vmatpush1.msra.mxu0 %v295
    %461 = vmatprep.subr.mxu0 0.0
    %462 = vmatpush1.msra.mxu0 %v294
    %463 = vmatprep.subr.mxu0 0.0
    %464 = vmatpush1.msra.mxu0 %v293
    %465 = vmatprep.subr.mxu0 0.0
    %466 = vmatpush1.msra.mxu0 %v292
    %467 = vmatprep.subr.mxu0 0.0
    %468 = vmatpush1.msra.mxu0 %v291
    %469 = vmatprep.subr.mxu0 0.0
    %470 = vmatpush1.msra.mxu0 %v290
    %471 = vmatprep.subr.mxu0 0.0
    %472 = vmatpush1.msra.mxu0 %v289
    %473 = vmatprep.subr.mxu0 0.0
    %474 = vmatpush1.msra.mxu0 %v288
    %475 = vmatprep.subr.mxu0 0.0
    %476 = vmatpush1.msra.mxu0 %v287
    %477 = vmatprep.subr.mxu0 0.0
    %478 = vmatpush1.msra.mxu0 %v286
    %479 = vmatprep.subr.mxu0 0.0
    %480 = vmatpush1.msra.mxu0 %v285
    %481 = vmatprep.subr.mxu0 0.0
    %482 = vmatpush1.msra.mxu0 %v284
    %483 = vmatprep.subr.mxu0 0.0
    %484 = vmatpush2.msra.mxu0 0.0
    %485 = vmatprep.subr.mxu0 0.0
    %486 = vmatpush2.msra.mxu0 0.0
    %487 = vmatprep.subr.mxu0 0.0
    %488 = vmatpush2.msra.mxu0 0.0
    %489 = vmatprep.subr.mxu0 0.0
    %490 = vmatpush2.msra.mxu0 0.0
    %491 = vmatprep.subr.mxu0 0.0
    %492 = vmatpush2.msra.mxu0 0.0
    %493 = vmatprep.subr.mxu0 0.0
    %494 = vmatpush2.msra.mxu0 0.0
    %495 = vmatprep.subr.mxu0 0.0
    %496 = vmatpush2.msra.mxu0 0.0
    %497 = vmatprep.subr.mxu0 0.0
    %498 = vmatpush2.msra.mxu0 0.0
    %499 = vmatprep.subr.mxu0 0.0
    %500 = vmatpush2.msra.mxu0 0.0
    %501 = vmatprep.subr.mxu0 0.0
    %502 = vmatpush2.msra.mxu0 0.0
    %503 = vmatprep.subr.mxu0 0.0
    %504 = vmatpush2.msra.mxu0 0.0
    %505 = vmatprep.subr.mxu0 0.0
    %506 = vmatpush2.msra.mxu0 0.0
    %507 = vmatprep.subr.mxu0 0.0
    %508 = vmatpush2.msra.mxu0 0.0
    %509 = vmatprep.subr.mxu0 0.0
    %510 = vmatpush2.msra.mxu0 0.0
    %511 = vmatprep.subr.mxu0 0.0
    %512 = vmatpush2.msra.mxu0 0.0
    %513 = vmatprep.subr.mxu0 0.0
    %514 = vmatpush2.msra.mxu0 0.0
    %515 = vmatprep.mubr.f32.mxu0 0.0
    %516 = vmatmul.mubr.f32.gmra.mxu0 %v450
    %v517 = vpop.f32.mrf.mxu0
    %v518 = vadd.f32 0.0, %v517
    %v519 = vpop.f32.mrf.mxu0
    %520 = vdwg.mxu0
    %521 = vrot.lane.b32.xlu0 %v212, 96
    %v522 = vpop.permute.xlu0 %521
    %523 = vrot.lane.b32.xlu0 %v281, 96
    %v524 = vpop.permute.xlu0 %523
    %v525 = vmul.f32 %v210, %v522
    %526 = vmatprep.subr.mxu0 0.0
    %527 = vmatpush1.msra.mxu0 %v299
    %528 = vmatprep.subr.mxu0 0.0
    %529 = vmatpush1.msra.mxu0 %v298
    %530 = vmatprep.subr.mxu0 0.0
    %531 = vmatpush1.msra.mxu0 %v297
    %532 = vmatprep.subr.mxu0 0.0
    %533 = vmatpush1.msra.mxu0 %v296
    %534 = vmatprep.subr.mxu0 0.0
    %535 = vmatpush1.msra.mxu0 %v295
    %536 = vmatprep.subr.mxu0 0.0
    %537 = vmatpush1.msra.mxu0 %v294
    %538 = vmatprep.subr.mxu0 0.0
    %539 = vmatpush1.msra.mxu0 %v293
    %540 = vmatprep.subr.mxu0 0.0
    %541 = vmatpush1.msra.mxu0 %v292
    %542 = vmatprep.subr.mxu0 0.0
    %543 = vmatpush1.msra.mxu0 %v291
    %544 = vmatprep.subr.mxu0 0.0
    %545 = vmatpush1.msra.mxu0 %v290
    %546 = vmatprep.subr.mxu0 0.0
    %547 = vmatpush1.msra.mxu0 %v289
    %548 = vmatprep.subr.mxu0 0.0
    %549 = vmatpush1.msra.mxu0 %v288
    %550 = vmatprep.subr.mxu0 0.0
    %551 = vmatpush1.msra.mxu0 %v287
    %552 = vmatprep.subr.mxu0 0.0
    %553 = vmatpush1.msra.mxu0 %v286
    %554 = vmatprep.subr.mxu0 0.0
    %555 = vmatpush1.msra.mxu0 %v285
    %556 = vmatprep.subr.mxu0 0.0
    %557 = vmatpush1.msra.mxu0 %v284
    %558 = vmatprep.subr.mxu0 0.0
    %559 = vmatpush2.msra.mxu0 0.0
    %560 = vmatprep.subr.mxu0 0.0
    %561 = vmatpush2.msra.mxu0 0.0
    %562 = vmatprep.subr.mxu0 0.0
    %563 = vmatpush2.msra.mxu0 0.0
    %564 = vmatprep.subr.mxu0 0.0
    %565 = vmatpush2.msra.mxu0 0.0
    %566 = vmatprep.subr.mxu0 0.0
    %567 = vmatpush2.msra.mxu0 0.0
    %568 = vmatprep.subr.mxu0 0.0
    %569 = vmatpush2.msra.mxu0 0.0
    %570 = vmatprep.subr.mxu0 0.0
    %571 = vmatpush2.msra.mxu0 0.0
    %572 = vmatprep.subr.mxu0 0.0
    %573 = vmatpush2.msra.mxu0 0.0
    %574 = vmatprep.subr.mxu0 0.0
    %575 = vmatpush2.msra.mxu0 0.0
    %576 = vmatprep.subr.mxu0 0.0
    %577 = vmatpush2.msra.mxu0 0.0
    %578 = vmatprep.subr.mxu0 0.0
    %579 = vmatpush2.msra.mxu0 0.0
    %580 = vmatprep.subr.mxu0 0.0
    %581 = vmatpush2.msra.mxu0 0.0
    %582 = vmatprep.subr.mxu0 0.0
    %583 = vmatpush2.msra.mxu0 0.0
    %584 = vmatprep.subr.mxu0 0.0
    %585 = vmatpush2.msra.mxu0 0.0
    %586 = vmatprep.subr.mxu0 0.0
    %587 = vmatpush2.msra.mxu0 0.0
    %588 = vmatprep.subr.mxu0 0.0
    %589 = vmatpush2.msra.mxu0 0.0
    %590 = vmatprep.mubr.f32.mxu0 0.0
    %591 = vmatmul.mubr.f32.gmra.mxu0 %v525
    %v592 = vpop.f32.mrf.mxu0
    %v593 = vadd.f32 0.0, %v592
    %v594 = vpop.f32.mrf.mxu0
    %595 = vdwg.mxu0
    %v596 = vmax.f32 %v368, %v443
    %v597 = vmax.f32 %v596, %v518
    %v598 = vmax.f32 %v597, %v593
    %v599 = vsub.f32 %v368, %v598
    %v600 = vmul.f32 %v599, 1.442695
    %v601 = vpow.pop %v600
    %v602 = vsub.f32 %v443, %v598
    %v603 = vmul.f32 %v602, 1.442695
    %v604 = vpow.pop %v603
    %v605 = vsub.f32 %v518, %v598
    %v606 = vmul.f32 %v605, 1.442695
    %v607 = vpow.pop %v606
    %v608 = vsub.f32 %v593, %v598
    %v609 = vmul.f32 %v608, 1.442695
    %v610 = vpow.pop %v609
    %v611 = vadd.f32 %v601, %v604
    %v612 = vadd.f32 %v611, %v607
    %v613 = vadd.f32 %v612, %v610
    %v614 = vrcp.pop %v613
    %v615 = vmul.f32 %v601, %v281
    %v616 = vmul.f32 %v604, %v374
    %v617 = vadd.f32 %v615, %v616
    %v618 = vmul.f32 %v607, %v449
    %v619 = vadd.f32 %v617, %v618
    %v620 = vmul.f32 %v610, %v524
    %v621 = vadd.f32 %v619, %v620
    %v622 = vmul.f32 %v621, %v614
    %v623 = vld [vmem:[#allocation8] sm:$0xff]
    %v624 = vld [vmem:[#allocation8 + $0x8] sm:$0xff]
    %v625 = vld [vmem:[#allocation8 + $0x10] sm:$0xff]
    %v626 = vld [vmem:[#allocation8 + $0x18] sm:$0xff]
    %v627 = vld [vmem:[#allocation8 + $0x20] sm:$0xff]
    %v628 = vld [vmem:[#allocation8 + $0x28] sm:$0xff]
    %v629 = vld [vmem:[#allocation8 + $0x30] sm:$0xff]
    %v630 = vld [vmem:[#allocation8 + $0x38] sm:$0xff]
    %v631 = vld [vmem:[#allocation8 + $0x40] sm:$0xff]
    %v632 = vld [vmem:[#allocation8 + $0x48] sm:$0xff]
    %v633 = vld [vmem:[#allocation8 + $0x50] sm:$0xff]
    %v634 = vld [vmem:[#allocation8 + $0x58] sm:$0xff]
    %v635 = vld [vmem:[#allocation8 + $0x60] sm:$0xff]
    %v636 = vld [vmem:[#allocation8 + $0x68] sm:$0xff]
    %v637 = vld [vmem:[#allocation8 + $0x70] sm:$0xff]
    %v638 = vld [vmem:[#allocation8 + $0x78] sm:$0xff]
    %v639 = vld [vmem:[%s5] sm:$0x1]
    %v641 = vlaneseq
    %v642 = vshrl.u32 %v641, 7
    %v643 = vsub.s32 0, %v642
    %v644 = vrot.slane %v639, %v643
    %646 = vmatprep.subr.mxu0 0.0
    %647 = vmatpush1.msra.mxu0 %v638
    %648 = vmatprep.subr.mxu0 0.0
    %649 = vmatpush1.msra.mxu0 %v637
    %650 = vmatprep.subr.mxu0 0.0
    %651 = vmatpush1.msra.mxu0 %v636
    %652 = vmatprep.subr.mxu0 0.0
    %653 = vmatpush1.msra.mxu0 %v635
    %654 = vmatprep.subr.mxu0 0.0
    %655 = vmatpush1.msra.mxu0 %v634
    %656 = vmatprep.subr.mxu0 0.0
    %657 = vmatpush1.msra.mxu0 %v633
    %658 = vmatprep.subr.mxu0 0.0
    %659 = vmatpush1.msra.mxu0 %v632
    %660 = vmatprep.subr.mxu0 0.0
    %661 = vmatpush1.msra.mxu0 %v631
    %662 = vmatprep.subr.mxu0 0.0
    %663 = vmatpush1.msra.mxu0 %v630
    %664 = vmatprep.subr.mxu0 0.0
    %665 = vmatpush1.msra.mxu0 %v629
    %666 = vmatprep.subr.mxu0 0.0
    %667 = vmatpush1.msra.mxu0 %v628
    %668 = vmatprep.subr.mxu0 0.0
    %669 = vmatpush1.msra.mxu0 %v627
    %670 = vmatprep.subr.mxu0 0.0
    %671 = vmatpush1.msra.mxu0 %v626
    %672 = vmatprep.subr.mxu0 0.0
    %673 = vmatpush1.msra.mxu0 %v625
    %674 = vmatprep.subr.mxu0 0.0
    %675 = vmatpush1.msra.mxu0 %v624
    %676 = vmatprep.subr.mxu0 0.0
    %677 = vmatpush1.msra.mxu0 %v623
    %678 = vmatprep.subr.mxu0 0.0
    %679 = vmatpush2.msra.mxu0 0.0
    %680 = vmatprep.subr.mxu0 0.0
    %681 = vmatpush2.msra.mxu0 0.0
    %682 = vmatprep.subr.mxu0 0.0
    %683 = vmatpush2.msra.mxu0 0.0
    %684 = vmatprep.subr.mxu0 0.0
    %685 = vmatpush2.msra.mxu0 0.0
    %686 = vmatprep.subr.mxu0 0.0
    %687 = vmatpush2.msra.mxu0 0.0
    %688 = vmatprep.subr.mxu0 0.0
    %689 = vmatpush2.msra.mxu0 0.0
    %690 = vmatprep.subr.mxu0 0.0
    %691 = vmatpush2.msra.mxu0 0.0
    %692 = vmatprep.subr.mxu0 0.0
    %693 = vmatpush2.msra.mxu0 0.0
    %694 = vmatprep.subr.mxu0 0.0
    %695 = vmatpush2.msra.mxu0 0.0
    %696 = vmatprep.subr.mxu0 0.0
    %697 = vmatpush2.msra.mxu0 0.0
    %698 = vmatprep.subr.mxu0 0.0
    %699 = vmatpush2.msra.mxu0 0.0
    %700 = vmatprep.subr.mxu0 0.0
    %701 = vmatpush2.msra.mxu0 0.0
    %702 = vmatprep.subr.mxu0 0.0
    %703 = vmatpush2.msra.mxu0 0.0
    %704 = vmatprep.subr.mxu0 0.0
    %705 = vmatpush2.msra.mxu0 0.0
    %706 = vmatprep.subr.mxu0 0.0
    %707 = vmatpush2.msra.mxu0 0.0
    %708 = vmatprep.subr.mxu0 0.0
    %709 = vmatpush2.msra.mxu0 0.0
    %710 = vmatprep.mubr.f32.mxu0 0.0
    %711 = vmatmul.mubr.f32.gmra.mxu0 %v622
    %v712 = vpop.f32.mrf.mxu0
    %v713 = vadd.f32 %v644, %v712
    %v714 = vpop.f32.mrf.mxu0
    %715 = vdwg.mxu0
    %716 = vst [vmem:[#allocation10] sm:$0x3] %v713
    // Predicated region
    $region42: #{tpu_custom_call.1} parent=1 // pred_check
      _
    $region43: #{tpu_custom_call.1} parent=1 // pred_check_branch
      %718 = sbr.rel (0) target = $region45
    $region44: #{tpu_custom_call.1} parent=1 // pred_region
      %s720 = ssub.s32 32, 32
      %721 = vsyncadd [#allocation4], %s720
      %s723 = sshll.u32 [#allocation10], 4
      %s724 = int_to_ptr.vmem [resolvable:$true] %s723
      %726 = dma.vmem_to_hbm [thread:$0]  %s724, 32, %s6, [#allocation4]
    $region45: #{tpu_custom_call.1} parent=1 // pred_fallthru
      _
    // Predicated region
    $region46: #{tpu_custom_call.1} parent=1 // pred_check
      _
    $region47: #{tpu_custom_call.1} parent=1 // pred_check_branch
      %728 = sbr.rel (0) target = $region49
    $region48: #{tpu_custom_call.1} parent=1 // pred_region
      %729 = dma.done [#allocation4], 32
    $region49: #{tpu_custom_call.1} parent=1 // pred_fallthru
      _
    %730 = vsyncpa [#allocation3], 1
    %731 = vsyncpa [#allocation6], 1
    %732 = vsyncpa [#allocation9], 1
    %733 = vsyncpa [#allocation4], 1

</llo_original>
